<compile_context>
chip_gen: v5e
topology: v5e:2x2
jax: 0.10.0
libtpu: 0.0.40
codegen_flags: <defaults>
</compile_context>

<pallas_src>
import functools

import jax
import jax.numpy as jnp
from jax import lax
from jax.experimental import pallas as pl
from jax.experimental.pallas import tpu as pltpu


# ----------------------------------------------------------------------------
# Kernel: one MXU matmul per streamed vocab tile.
# ----------------------------------------------------------------------------
def _kr_matmul_kernel(wc_ref, w_ref, out_ref):
    # wc_ref : [B, D]   resident across the whole grid (same block every step)
    # w_ref  : [TN, D]  one streamed vocab tile per grid step
    # out_ref: [B, TN]  lane-dense output tile
    out_ref[...] = lax.dot_general(
        wc_ref[...],                                  # [B, D]
        w_ref[...],                                   # [TN, D]
        dimension_numbers=(((1,), (1,)), ((), ())),   # contract D <-> D, no transpose
        preferred_element_type=jnp.float32,
    ).astype(out_ref.dtype)


def _pick_block_v(V, D, w_itemsize, block_v=None):
    """Vocab tile size: ~2 MiB per W tile, multiple of 128, capped at V."""
    if block_v is not None:
        tn = min(int(block_v), V)
    else:
        target_tile_bytes = 2 * 1024 * 1024
        tn = min(max(128, target_tile_bytes // (D * w_itemsize)), V)
    if tn < V:
        tn = max(128, (tn // 128) * 128)
    return tn


# ----------------------------------------------------------------------------
# Forward wrapper (gather + Gaussian weighting as tiny JAX glue, then kernel).
# ----------------------------------------------------------------------------
def kr_embedding_forward(embedding_weights, context, center, sigma=1.0, *,
                         w_lowp=None, block_v=None, out_dtype=jnp.float32):
    """Forward pass of KREmbedding.

    embedding_weights: [V, D] f32 parameter (used for the gather/weighting)
    context          : [B, C] int32 indices
    center           : [B]    int32 indices
    w_lowp           : optional cached low-precision copy of the table
                       (e.g. bf16), streamed by the kernel instead of f32 W.
    returns          : [B, V] similarity matrix (out_dtype)
    """
    V, D = embedding_weights.shape
    w = embedding_weights if w_lowp is None else w_lowp
    assert w.shape == (V, D)

    # ---- Gaussian-kernel weighting: touches B*C + B rows only (tiny) -------
    ctx = embedding_weights[context].astype(jnp.float32)      # [B, C, D]
    cen = embedding_weights[center].astype(jnp.float32)       # [B, D]
    diff = ctx - cen[:, None, :]                              # [B, C, D]
    dist_sq = jnp.sum(diff * diff, axis=2)                    # [B, C]
    weights = jnp.exp(dist_sq * (-1.0 / (2.0 * float(sigma) ** 2)))
    weights = weights / (jnp.sum(weights, axis=1, keepdims=True) + 1e-8)
    weighted_context = jnp.sum(weights[:, :, None] * ctx, axis=1)   # [B, D] f32
    wc = weighted_context.astype(w.dtype)                     # tiny [B, D] cast

    B = wc.shape[0]
    w_bytes = jnp.dtype(w.dtype).itemsize
    out_bytes = jnp.dtype(out_dtype).itemsize

    tn = _pick_block_v(V, D, w_bytes, block_v)
    grid = (pl.cdiv(V, tn),)

    cost = pl.CostEstimate(
        flops=2 * B * V * D,
        transcendentals=0,
        bytes_accessed=V * D * w_bytes + B * V * out_bytes + B * D * w_bytes,
    )

    return pl.pallas_call(
        _kr_matmul_kernel,
        out_shape=jax.ShapeDtypeStruct((B, V), out_dtype),
        grid=grid,
        in_specs=[
            pl.BlockSpec((B, D), lambda j: (0, 0)),    # resident weighted_context
            pl.BlockSpec((tn, D), lambda j: (j, 0)),   # streamed W tiles
        ],
        out_specs=pl.BlockSpec((B, tn), lambda j: (0, j)),
        compiler_params=pltpu.CompilerParams(
            dimension_semantics=("parallel",),         # V tiles are independent
        ),
        cost_estimate=cost,
    )(wc, w)


# ----------------------------------------------------------------------------
# Pure-JAX reference mirroring the PyTorch forward.
# ----------------------------------------------------------------------------
def kr_embedding_reference(embedding_weights, context, center, sigma=1.0):
    context_vecs = embedding_weights[context]            # [B, C, D]
    center_vec = embedding_weights[center]               # [B, D]
    diff = context_vecs - center_vec[:, None, :]
    dist_sq = jnp.sum(diff ** 2, axis=2)
    weights = jnp.exp(-dist_sq / (2.0 * sigma ** 2))
    weights = weights / (jnp.sum(weights, axis=1, keepdims=True) + 1e-8)
    weighted_context = jnp.sum(weights[:, :, None] * context_vecs, axis=1)
    return weighted_context @ embedding_weights.T


if __name__ == "__main__":
    vocab_size = 512
    embedding_dim = 128
    batch = 8
    context_size = 8
    sigma = 1.0

    key = jax.random.PRNGKey(0)
    k_w, k_ctx, k_cen = jax.random.split(key, 3)

    # Deterministic parameter init matching torch.randn(V, D) * (1/sqrt(D)).
    embedding_weights = (
        jax.random.normal(k_w, (vocab_size, embedding_dim), dtype=jnp.float32)
        * (1.0 / embedding_dim ** 0.5)
    )
    context = jax.random.randint(
        k_ctx, (batch, context_size), 0, vocab_size, dtype=jnp.int32
    )
    center = jax.random.randint(k_cen, (batch,), 0, vocab_size, dtype=jnp.int32)

    ref = kr_embedding_reference(embedding_weights, context, center, sigma)

    # --- Path 1: stream the f32 table directly (no per-call cast), tiled ----
    # block_v=128 exercises the tiled/pipelined path (grid of 4 vocab tiles).
    out_f32 = kr_embedding_forward(
        embedding_weights, context, center, sigma, block_v=128
    )
    out_f32 = jax.block_until_ready(out_f32)
    assert out_f32.shape == (batch, vocab_size)
    assert jnp.allclose(out_f32, ref, rtol=2e-3, atol=2e-3), "f32 path mismatch"

    # --- Path 2: cached low-precision W copy (created ONCE, outside forward) -
    w_bf16 = embedding_weights.astype(jnp.bfloat16)   # cached "parameter" copy
    out_bf16 = kr_embedding_forward(
        embedding_weights, context, center, sigma, w_lowp=w_bf16
    )
    out_bf16 = jax.block_until_ready(out_bf16)
    assert out_bf16.shape == (batch, vocab_size)
    assert jnp.allclose(out_bf16, ref, rtol=2e-2, atol=2e-2), "bf16 path mismatch"

    print("KERNEL_OK")
</pallas_src>

<mosaic_0001>
module attributes {stable_mosaic.version = 11 : i64} {
  func.func @_kr_matmul_kernel(%arg0: i32, %arg1: memref<8x128xf32, #tpu.memory_space<vmem>>, %arg2: memref<128x128xf32, #tpu.memory_space<vmem>>, %arg3: memref<8x128xf32, #tpu.memory_space<vmem>>) attributes {dimension_semantics = [#tpu.dimension_semantics<parallel>], iteration_bounds = array<i64: 4>, scalar_prefetch = 0 : i64, scratch_operands = 0 : i64, tpu.core_type = #tpu.core_type<tc>, window_params = [{pipeline_mode = #tpu.pipeline_mode<synchronous>, transform_indices = @transform_0, window_bounds = array<i64: 8, 128>}, {transform_indices = @transform_1, window_bounds = array<i64: 128, 128>}, {transform_indices = @transform_2, window_bounds = array<i64: 8, 128>}]} {
    %c0 = arith.constant 0 : index
    %c0_0 = arith.constant 0 : index
    %0 = vector.load %arg1[%c0, %c0_0] : memref<8x128xf32, #tpu.memory_space<vmem>>, vector<8x128xf32>
    %c0_1 = arith.constant 0 : index
    %c0_2 = arith.constant 0 : index
    %1 = vector.load %arg2[%c0_1, %c0_2] : memref<128x128xf32, #tpu.memory_space<vmem>>, vector<128x128xf32>
    %cst = arith.constant dense<0.000000e+00> : vector<8x128xf32>
    %2 = tpu.matmul %0, %1, %cst {dimension_numbers = #tpu.dot_dimension_numbers<[1], [1], [0], [0], [0, 0, 1, 0], [], []>} : vector<8x128xf32>, vector<128x128xf32>, vector<8x128xf32> -> vector<8x128xf32>
    %c0_3 = arith.constant 0 : index
    %c0_4 = arith.constant 0 : index
    %3 = vector.load %arg3[%c0_3, %c0_4] : memref<8x128xf32, #tpu.memory_space<vmem>>, vector<8x128xf32>
    tpu.vector_store %arg3[%c0_3, %c0_4], %2 {strides = array<i32>} : memref<8x128xf32, #tpu.memory_space<vmem>>, vector<8x128xf32>,
    return
  }
  func.func @transform_0(%arg0: i32) -> (i32, i32) {
    %c0_i32 = arith.constant 0 : i32
    %c0_i32_0 = arith.constant 0 : i32
    %c0_i32_1 = arith.constant 0 : i32
    return %c0_i32, %c0_i32_0 : i32, i32
  }
  func.func @transform_1(%arg0: i32) -> (i32, i32) {
    %c0_i32 = arith.constant 0 : i32
    %c0_i32_0 = arith.constant 0 : i32
    return %arg0, %c0_i32 : i32, i32
  }
  func.func @transform_2(%arg0: i32) -> (i32, i32) {
    %c0_i32 = arith.constant 0 : i32
    %c0_i32_0 = arith.constant 0 : i32
    return %c0_i32, %arg0 : i32, i32
  }
}

</mosaic_0001>

<llo_original>
// kernel: tpu_custom_call.1
$region0: #{tpu_custom_call.1}
  #allocation0 [shape = 'u32[]', space=smem, size = 0x4, offset = 0x4, fixed_abs, tag = 'smem constant byte address 0x4 - core index']
  #allocation1 [shape = 'u32[72,128]{1,0:T(1,128)}', space=vmem, size = 0x9000, scoped, tag = 'internal scratch']
  %s0 = inlined_call_operand.hbm [shape: f32[8,128], index: 0, kind: input, shape index: {}]
  %s1 = inlined_call_operand.hbm [shape: f32[512,128], index: 1, kind: input, shape index: {}]
  %s2 = inlined_call_operand.hbm [shape: f32[8,512], index: 2, kind: output, shape index: {}]
  %s3 = sld [smem:[#allocation0]]
  $region49: #{tpu_custom_call.1} parent=0
    _
  %s5 = ssub.s32 1, %s3
  %s6 = scalar_select 0, %s5, %s3
  $region1: #{tpu_custom_call.1} parent=0
    #allocation2 [shape = 'u8[4096]{0}', space=vmem, size = 0x1000, scoped, tag = 'input window, operand 0, single buffered']
    #allocation3 [shape = 's32[2]{0}', space=sflag, size = 0x8, scoped, tag = 'scoped memory for tpu_custom_call.1']
    #allocation4 [shape = 's32[2]{0}', space=sflag, size = 0x8, scoped, tag = 'scoped memory for tpu_custom_call.1']
    #allocation5 [shape = 'u8[131072]{0}', space=vmem, size = 0x20000, scoped, tag = 'input window, operand 1']
    #allocation6 [shape = 's32[2]{0}', space=sflag, size = 0x8, scoped, tag = 'scoped memory for tpu_custom_call.1']
    #allocation7 [shape = 'u8[8192]{0}', space=vmem, size = 0x2000, scoped, tag = 'output window, operand 0']
    %7 = vsyncpa [#allocation3], 0
    %8 = vsyncpa [#allocation6], 0
    %s9 = scalar_lea.sflag [#allocation6], 1
    %10 = vsyncpa %s9, 0
    %11 = vsyncpa [#allocation4], 0
    %s12 = scalar_lea.sflag [#allocation4], 1
    %13 = vsyncpa %s12, 0
    loop: start=0, step=1, limit=6
    $region2: #{tpu_custom_call.1} parent=1 // loop_pre_header
      _
    $region3: #{tpu_custom_call.1} parent=1 // loop_header
      %s15 = sphi 0, %s19
      %p16 = scmp.ge.s32.totalorder %s15, 6
      %s23 = sphi 0, %s23
      %s25 = sphi 0, %s23
      %s26 = sphi 0, %s25
      %s40 = sphi 0, %s26
      %s46 = sphi 0, %s48
      %s49 = sphi 0, %s46
      %s50 = sphi 0, %s49
      %s66 = sphi 0, %s50
      %s72 = sphi 0, %s74
      %s75 = sphi 0, %s72
      %s76 = sphi 0, %s75
      %s92 = sphi 0, %s76
    $region4: #{tpu_custom_call.1} parent=1 // loop_header_branch
      %18 = sbr.rel (%p16) target = $region8
    $region5: #{tpu_custom_call.1} parent=1 // loop_body
      %s20 = ssub.s32 %s15, 1
      %s21 = ssub.s32 %s15, 2
      %s22 = sadd.s32 %s15, 1
      %s24 = sadd.s32 %s23, 1
      %p27 = scmp.eq.s32.totalorder %s15, 3
      %p28 = scmp.ne.s32.totalorder %s23, %s25
      %p29 = scmp.eq.s32.totalorder %s15, 0
      %p30 = por %p28, %p29
      %p31 = scmp.ne.s32.totalorder %s23, %s25
      %p32 = scmp.eq.s32.totalorder %s20, 3
      %p33 = por %p31, %p32
      %p34 = scmp.ne.s32.totalorder %s25, %s26
      %p35 = scmp.eq.s32.totalorder %s20, 0
      %p36 = por %p34, %p35
      %p37 = scmp.ne.s32.totalorder %s25, %s26
      %p38 = scmp.eq.s32.totalorder %s21, 3
      %p39 = por %p37, %p38
      %p41 = scmp.ne.s32.totalorder %s26, %s40
      %p42 = scmp.eq.s32.totalorder %s21, 0
      %p43 = por %p41, %p42
      %s44 = ssub.s32 %s15, %s22
      %p45 = scmp.eq.s32.totalorder %s44, 0
      %s47 = sadd.s32 %s46, 1
      %s48 = scalar_select %p45, %s46, %s47
      %p51 = pneg %p45
      %p52 = scmp.eq.s32.totalorder %s15, 3
      %p53 = por %p51, %p52
      %p54 = scmp.ne.s32.totalorder %s46, %s49
      %p55 = scmp.eq.s32.totalorder %s15, 0
      %p56 = por %p54, %p55
      %p57 = scmp.ne.s32.totalorder %s46, %s49
      %p58 = scmp.eq.s32.totalorder %s20, 3
      %p59 = por %p57, %p58
      %p60 = scmp.ne.s32.totalorder %s49, %s50
      %p61 = scmp.eq.s32.totalorder %s20, 0
      %p62 = por %p60, %p61
      %p63 = scmp.ne.s32.totalorder %s49, %s50
      %p64 = scmp.eq.s32.totalorder %s21, 3
      %p65 = por %p63, %p64
      %p67 = scmp.ne.s32.totalorder %s50, %s66
      %p68 = scmp.eq.s32.totalorder %s21, 0
      %p69 = por %p67, %p68
      %s70 = ssub.s32 %s15, %s22
      %p71 = scmp.eq.s32.totalorder %s70, 0
      %s73 = sadd.s32 %s72, 1
      %s74 = scalar_select %p71, %s72, %s73
      %p77 = pneg %p71
      %p78 = scmp.eq.s32.totalorder %s15, 3
      %p79 = por %p77, %p78
      %p80 = scmp.ne.s32.totalorder %s72, %s75
      %p81 = scmp.eq.s32.totalorder %s15, 0
      %p82 = por %p80, %p81
      %p83 = scmp.ne.s32.totalorder %s72, %s75
      %p84 = scmp.eq.s32.totalorder %s20, 3
      %p85 = por %p83, %p84
      %p86 = scmp.ne.s32.totalorder %s75, %s76
      %p87 = scmp.eq.s32.totalorder %s20, 0
      %p88 = por %p86, %p87
      %p89 = scmp.ne.s32.totalorder %s75, %s76
      %p90 = scmp.eq.s32.totalorder %s21, 3
      %p91 = por %p89, %p90
      %p93 = scmp.ne.s32.totalorder %s76, %s92
      %p94 = scmp.eq.s32.totalorder %s21, 0
      %p95 = por %p93, %p94
      %p96 = scmp.le.s32.totalorder 1, %s15
      %p97 = scmp.lt.s32.totalorder %s15, 5
      %p98 = pnand %p96, %p97
      %p99 = pneg %p98
      // Predicated region
      $region9: #{tpu_custom_call.1} parent=5 // pred_check
        _
      $region10: #{tpu_custom_call.1} parent=5 // pred_check_branch
        %101 = sbr.rel (%p98) target = $region12
      $region11: #{tpu_custom_call.1} parent=5 // pred_region
        %s102 = ssub.s32 %s15, 1
        // Predicated region
        $region13: #{tpu_custom_call.1} parent=11 // pred_check
          %p103 = pneg %p36
        $region14: #{tpu_custom_call.1} parent=11 // pred_check_branch
          %105 = sbr.rel (%p103) target = $region16
        $region15: #{tpu_custom_call.1} parent=11 // pred_region
          %107 = vsyncadd [#allocation3], 0
          %s109 = sshll.u32 %s0, 4
          %s110 = int_to_ptr.hbm [resolvable:$true] %s109
          %s111 = sshll.u32 [#allocation2], 4
          %s112 = int_to_ptr.vmem [resolvable:$true] %s111
          %114 = dma.hbm_to_vmem [thread:$0]  %s110, 128, %s112, [#allocation3]
        $region16: #{tpu_custom_call.1} parent=11 // pred_fallthru
          _
      $region12: #{tpu_custom_call.1} parent=5 // pred_fallthru
        _
      %p115 = scmp.lt.s32.totalorder %s15, 4
      // Predicated region
      $region17: #{tpu_custom_call.1} parent=5 // pred_check
        %p116 = pneg %p115
      $region18: #{tpu_custom_call.1} parent=5 // pred_check_branch
        %118 = sbr.rel (%p116) target = $region20
      $region19: #{tpu_custom_call.1} parent=5 // pred_region
        // Predicated region
        $region21: #{tpu_custom_call.1} parent=19 // pred_check
          %p119 = pneg %p56
        $region22: #{tpu_custom_call.1} parent=19 // pred_check_branch
          %121 = sbr.rel (%p119) target = $region24
        $region23: #{tpu_custom_call.1} parent=19 // pred_region
          %s122 = sand.u32 %s46, 1
          %s123 = scalar_lea.sflag [#allocation6], %s122
          %s124 = sand.u32 %s46, 1
          %s125 = smul.addr %s124, 128
          %s126 = scalar_lea.vmem [#allocation5], %s125
          %s127 = smul.u32 16, %s15
          %129 = vsyncadd %s123, 0
          %s130 = smul.addr %s127, 8
          %s131 = scalar_lea.hbm %s1, %s130
          %s132 = sshll.u32 %s131, 4
          %s133 = int_to_ptr.hbm [resolvable:$true] %s132
          %s134 = sshll.u32 %s126, 4
          %s135 = int_to_ptr.vmem [resolvable:$true] %s134
          %140 = dma.hbm_to_vmem [thread:$0]  %s133, 2048, %s135, %s123, 128, 128, 8
        $region24: #{tpu_custom_call.1} parent=19 // pred_fallthru
          _
      $region20: #{tpu_custom_call.1} parent=5 // pred_fallthru
        _
      %p141 = scmp.le.s32.totalorder 1, %s15
      %p142 = scmp.lt.s32.totalorder %s15, 5
      %p143 = pnand %p141, %p142
      %p144 = pneg %p143
      // Predicated region
      $region25: #{tpu_custom_call.1} parent=5 // pred_check
        _
      $region26: #{tpu_custom_call.1} parent=5 // pred_check_branch
        %146 = sbr.rel (%p143) target = $region28
      $region27: #{tpu_custom_call.1} parent=5 // pred_region
        %s147 = ssub.s32 %s15, 1
        // Predicated region
        $region29: #{tpu_custom_call.1} parent=27 // pred_check
          %p148 = pneg %p36
        $region30: #{tpu_custom_call.1} parent=27 // pred_check_branch
          %150 = sbr.rel (%p148) target = $region32
        $region31: #{tpu_custom_call.1} parent=27 // pred_region
          %152 = dma.done [#allocation3], 128
        $region32: #{tpu_custom_call.1} parent=27 // pred_fallthru
          _
        %s153 = sand.u32 %s49, 1
        %s154 = scalar_lea.sflag [#allocation6], %s153
        %s155 = sand.u32 %s49, 1
        %s156 = smul.addr %s155, 128
        %s157 = scalar_lea.vmem [#allocation5], %s156
        // Predicated region
        $region33: #{tpu_custom_call.1} parent=27 // pred_check
          %p158 = pneg %p62
        $region34: #{tpu_custom_call.1} parent=27 // pred_check_branch
          %160 = sbr.rel (%p158) target = $region36
        $region35: #{tpu_custom_call.1} parent=27 // pred_region
          %162 = dma.done %s154, 2048
        $region36: #{tpu_custom_call.1} parent=27 // pred_fallthru
          _
        %p163 = pneg %p36
        %p164 = pneg %p33
        %s165 = sand.u32 %s49, 1
        %s166 = scalar_lea.sflag [#allocation6], %s165
        %s167 = sand.u32 %s49, 1
        %s168 = smul.addr %s167, 128
        %s169 = scalar_lea.vmem [#allocation5], %s168
        %p170 = pneg %p62
        %p171 = pneg %p59
        %p172 = pneg %p88
        %p173 = pneg %p85
        %s174 = sand.u32 %s75, 1
        %s175 = scalar_lea.sflag [#allocation4], %s174
        %s176 = sand.u32 %s75, 1
        %s177 = smul.addr %s176, 8
        %s178 = scalar_lea.vmem [#allocation7], %s177
        %s179 = smul.u32 16, %s20
        %v180 = vld [vmem:[#allocation2] sm:$0xff]
        %v181 = vld [vmem:[%s157] sm:$0xff]
        %v182 = vld [vmem:[%s157 + $0x8] sm:$0xff]
        %v183 = vld [vmem:[%s157 + $0x10] sm:$0xff]
        %v184 = vld [vmem:[%s157 + $0x18] sm:$0xff]
        %v185 = vld [vmem:[%s157 + $0x20] sm:$0xff]
        %v186 = vld [vmem:[%s157 + $0x28] sm:$0xff]
        %v187 = vld [vmem:[%s157 + $0x30] sm:$0xff]
        %v188 = vld [vmem:[%s157 + $0x38] sm:$0xff]
        %v189 = vld [vmem:[%s157 + $0x40] sm:$0xff]
        %v190 = vld [vmem:[%s157 + $0x48] sm:$0xff]
        %v191 = vld [vmem:[%s157 + $0x50] sm:$0xff]
        %v192 = vld [vmem:[%s157 + $0x58] sm:$0xff]
        %v193 = vld [vmem:[%s157 + $0x60] sm:$0xff]
        %v194 = vld [vmem:[%s157 + $0x68] sm:$0xff]
        %v195 = vld [vmem:[%s157 + $0x70] sm:$0xff]
        %v196 = vld [vmem:[%s157 + $0x78] sm:$0xff]
        %197 = vmatpush.xpose.msra.mxu0 %v196
        %198 = vmatpush.xpose.msra.mxu0 %v195
        %199 = vmatpush.xpose.msra.mxu0 %v194
        %200 = vmatpush.xpose.msra.mxu0 %v193
        %201 = vmatpush.xpose.msra.mxu0 %v192
        %202 = vmatpush.xpose.msra.mxu0 %v191
        %203 = vmatpush.xpose.msra.mxu0 %v190
        %204 = vmatpush.xpose.msra.mxu0 %v189
        %205 = vmatpush.xpose.msra.mxu0 %v188
        %206 = vmatpush.xpose.msra.mxu0 %v187
        %207 = vmatpush.xpose.msra.mxu0 %v186
        %208 = vmatpush.xpose.msra.mxu0 %v185
        %209 = vmatpush.xpose.msra.mxu0 %v184
        %210 = vmatpush.xpose.msra.mxu0 %v183
        %211 = vmatpush.xpose.msra.mxu0 %v182
        %212 = vmatpush.xpose.msra.mxu0 %v181
        %213 = vmatmul.f32.gmra.mxu0 %v180
        %v214 = vpop.f32.mrf.mxu0
        %v215 = vadd.f32 0.0, %v214
        %216 = vdwg.mxu0
        %217 = vst [vmem:[%s178] sm:$0xff] %v215
        %s218 = sand.u32 %s75, 1
        %s219 = scalar_lea.sflag [#allocation4], %s218
        %s220 = sand.u32 %s75, 1
        %s221 = smul.addr %s220, 8
        %s222 = scalar_lea.vmem [#allocation7], %s221
        // Predicated region
        $region37: #{tpu_custom_call.1} parent=27 // pred_check
          %p223 = pneg %p85
        $region38: #{tpu_custom_call.1} parent=27 // pred_check_branch
          %225 = sbr.rel (%p223) target = $region40
        $region39: #{tpu_custom_call.1} parent=27 // pred_region
          %227 = vsyncadd %s219, 0
          %s228 = smul.addr %s20, 8
          %s229 = scalar_lea.hbm %s2, %s228
          %s231 = sshll.u32 %s222, 4
          %s232 = int_to_ptr.vmem [resolvable:$true] %s231
          %s233 = sshll.u32 %s229, 4
          %s234 = int_to_ptr.hbm [resolvable:$true] %s233
          %236 = dma.vmem_to_hbm [thread:$0]  %s232, 128, %s234, %s219
        $region40: #{tpu_custom_call.1} parent=27 // pred_fallthru
          _
      $region28: #{tpu_custom_call.1} parent=5 // pred_fallthru
        _
      %p237 = scmp.le.s32.totalorder 2, %s15
      // Predicated region
      $region41: #{tpu_custom_call.1} parent=5 // pred_check
        %p238 = pneg %p237
      $region42: #{tpu_custom_call.1} parent=5 // pred_check_branch
        %240 = sbr.rel (%p238) target = $region44
      $region43: #{tpu_custom_call.1} parent=5 // pred_region
        %s241 = ssub.s32 %s15, 2
        // Predicated region
        $region45: #{tpu_custom_call.1} parent=43 // pred_check
          %p242 = pneg %p91
        $region46: #{tpu_custom_call.1} parent=43 // pred_check_branch
          %244 = sbr.rel (%p242) target = $region48
        $region47: #{tpu_custom_call.1} parent=43 // pred_region
          %s245 = sand.u32 %s76, 1
          %s246 = scalar_lea.sflag [#allocation4], %s245
          %s247 = sand.u32 %s76, 1
          %s248 = smul.addr %s247, 8
          %s249 = scalar_lea.vmem [#allocation7], %s248
          %251 = dma.done %s246, 128
        $region48: #{tpu_custom_call.1} parent=43 // pred_fallthru
          _
      $region44: #{tpu_custom_call.1} parent=5 // pred_fallthru
        _
    $region6: #{tpu_custom_call.1} parent=1 // loop_footer
      %s19 = sadd.s32 1, %s15
    $region7: #{tpu_custom_call.1} parent=1 // loop_footer_branch
      %14 = sbr.rel target = $region3
    $region8: #{tpu_custom_call.1} parent=1 // loop_exit
      _
    %252 = vsyncpa [#allocation3], 1
    %s253 = scalar_lea.sflag [#allocation3], 1
    %254 = vsyncpa %s253, 1
    %255 = vsyncpa [#allocation6], 1
    %s256 = scalar_lea.sflag [#allocation6], 1
    %257 = vsyncpa %s256, 1
    %258 = vsyncpa [#allocation4], 1
    %s259 = scalar_lea.sflag [#allocation4], 1
    %260 = vsyncpa %s259, 1

</llo_original>
